<compile_context>
chip_gen: v7x
topology: tpu7x:2x2x1
jax: 0.10.0
libtpu: 0.0.40
codegen_flags: <defaults>
</compile_context>

<pallas_src>
import functools

import jax
import jax.numpy as jnp
from jax.experimental import pallas as pl
from jax.experimental.pallas import tpu as pltpu

_LANES = 128
_WIDE = 1024                      # preferred lane-dense slab width (8 vregs/row)
_VMEM_LIMIT = 40 * 1024 * 1024    # explicit scoped limit; safe on v5e/v6e/v7x


# ---------------------------------------------------------------------------
# Per-generation block sizing
# ---------------------------------------------------------------------------
@functools.lru_cache(maxsize=None)
def _tile_elems():
    """Elements per input block: ~2 MiB f32 (v7x / unknown), ~4 MiB (v5e/v6e)."""
    try:
        vmem = pltpu.get_tpu_info().vmem_capacity_bytes
        if vmem is not None and vmem >= 100 * 1024 * 1024:   # v5e / v6e (128 MiB)
            return 1024 * 1024                               # 4 MiB f32 per block
    except Exception:
        pass
    return 512 * 1024                                        # 2 MiB f32 per block


@functools.lru_cache(maxsize=None)
def _mse_geometry(n):
    """Slab geometry for a flat element count n (n % 128 == 0 guaranteed)."""
    for width in (_WIDE, 512, 256, _LANES):
        if n % width == 0:
            break
    rows = n // width
    tile_rows = _tile_elems() // width            # multiple of 8 for all widths
    if rows <= tile_rows:
        tile_rows = rows                          # single full-extent block
        num_blocks = 1
    else:
        num_blocks = -(-rows // tile_rows)        # ceil-div; last block may be ragged
    needs_mask = (rows % tile_rows) != 0
    return width, rows, tile_rows, num_blocks, needs_mask


# ---------------------------------------------------------------------------
# `.to(self.device)` equivalent — a true no-op (perf review item #1)
# ---------------------------------------------------------------------------
def pallas_device_copy(x):
    # torch.Tensor.to(device) on an already-resident tensor is a no-op; running
    # an identity kernel would be a pure HBM read+write with zero compute.
    # TODO(synk): a genuine cross-device move would be jax.device_put, not a kernel.
    return jnp.asarray(x)


# ---------------------------------------------------------------------------
# Pallas kernel: tiled sum-of-squared-differences (Model.compare(..., 'mse'))
# ---------------------------------------------------------------------------
def _mse_sum_kernel(n_ref, a_ref, b_ref, o_ref, acc_ref, *,
                    tile_rows, width, needs_mask):
    i = pl.program_id(0)

    @pl.when(i == 0)
    def _init():
        acc_ref[...] = jnp.zeros_like(acc_ref)

    diff = a_ref[...].astype(jnp.float32) - b_ref[...].astype(jnp.float32)
    sq = diff * diff

    if needs_mask:
        # Only the ragged last block can contain out-of-range (garbage) rows;
        # the per-element check is pure VPU work, fully hidden under the DMA.
        row = jax.lax.broadcasted_iota(jnp.int32, (tile_rows, width), 0)
        col = jax.lax.broadcasted_iota(jnp.int32, (tile_rows, width), 1)
        # TODO(synk): int32 flat index limits inputs to < 2^31 elements.
        flat_idx = (i * tile_rows + row) * width + col
        sq = jnp.where(flat_idx < n_ref[0], sq, 0.0)

    # Element-wise partial sums: no per-step reduce, no scalar dependency chain.
    acc_ref[...] += sq

    @pl.when(i == pl.num_programs(0) - 1)
    def _finalize():
        # Single cross-lane/sublane reduce + single (1,1) store at the end.
        o_ref[...] = jnp.sum(acc_ref[...], keepdims=True)


@functools.lru_cache(maxsize=None)
def _mse_sum_call(num_blocks, tile_rows, width, needs_mask):
    kernel = functools.partial(_mse_sum_kernel, tile_rows=tile_rows,
                               width=width, needs_mask=needs_mask)
    return pl.pallas_call(
        kernel,
        out_shape=jax.ShapeDtypeStruct((1, 1), jnp.float32),
        grid_spec=pltpu.PrefetchScalarGridSpec(
            num_scalar_prefetch=1,                 # n lives in SMEM
            grid=(num_blocks,),
            in_specs=[
                pl.BlockSpec((tile_rows, width), lambda i, n: (i, 0)),
                pl.BlockSpec((tile_rows, width), lambda i, n: (i, 0)),
            ],
            out_specs=pl.BlockSpec((1, 1), lambda i, n: (0, 0)),
            scratch_shapes=[pltpu.VMEM((tile_rows, width), jnp.float32)],
        ),
        compiler_params=pltpu.CompilerParams(
            dimension_semantics=("arbitrary",),    # reduction axis
            vmem_limit_bytes=_VMEM_LIMIT,
        ),
    )


@jax.jit
def _mse_jit(a, b):
    n = a.size                                    # static under jit
    if n == 0:
        return jnp.float32(0.0)
    af = a.reshape(-1)
    bf = b.reshape(-1)
    if n % _LANES != 0:
        # TODO(synk): non-128-divisible sizes use one fused XLA pass — strictly
        # cheaper than padding both inputs through HBM to reach the kernel.
        d = af.astype(jnp.float32) - bf.astype(jnp.float32)
        return jnp.mean(d * d)
    width, rows, tile_rows, num_blocks, needs_mask = _mse_geometry(n)
    a2 = af.reshape(rows, width)                  # free bitcast under jit (row-major)
    b2 = bf.reshape(rows, width)
    n_arr = jnp.full((1,), n, jnp.int32)
    total = _mse_sum_call(num_blocks, tile_rows, width, needs_mask)(n_arr, a2, b2)
    return total[0, 0] * jnp.float32(1.0 / n)     # 1/n scale outside the kernel


def pallas_mse(a, b):
    a = jnp.asarray(a)
    b = jnp.asarray(b)
    # TODO(synk): torch mse_loss broadcasts / errors on shape mismatch; here we
    # only require equal element counts and compare flat element-by-element.
    assert a.size == b.size, "pallas_mse: element count mismatch"
    return _mse_jit(a, b)


# ---------------------------------------------------------------------------
# Model / EmptyModel ported to JAX (Python-level control flow kept identical)
# ---------------------------------------------------------------------------
class Attributes:
    def __init__(self, shape=None, labels=None):
        self.shape = shape
        self.labels = labels


class Model:
    GEN_AND_PRED = 0
    GEN = 1
    PRED = 2
    LEARN_GEN_AND_PRED = 3
    LEARN_GEN = 4
    LEARN_PRED = 5
    FORWARD_MODES = [GEN_AND_PRED, GEN, PRED]
    LEARN_MODES = [LEARN_GEN_AND_PRED, LEARN_GEN, LEARN_PRED]

    def __init__(self, generator, predictor, attributes, seed=-1):
        assert generator is not None or predictor is not None
        self.generator = generator
        self.predictor = predictor
        self.attributes = attributes
        self.seed = seed
        self.out = lambda x: None
        assert len(self.attributes) == 2

    def forward(self, u, du, y, d, first=False):
        mode = Model.detect_forward_mode(du, u, y, d)
        if mode == Model.GEN_AND_PRED:
            y = self.generator.forward(u, du, first) if self.generator is not None else None
            # TODO(synk): upstream PyTorch calls y.detach() here, which would raise for
            # EmptyModel (y is None); we pass y through unchanged instead of faking it.
            d = self.predictor.forward(y, first) if self.predictor is not None else None
            return (y, d)
        elif mode == Model.GEN:
            y = self.generator.forward(u, du, first) if self.generator is not None else None
            return (y, d)
        elif mode == Model.PRED:
            d = self.predictor.forward(y, first) if self.predictor is not None else None
            # `.to(self.device)` -> no-op on an already-resident array.
            # TODO(synk): upstream calls d.to(device) unconditionally, which would raise
            # for EmptyModel (d is None); we guard with `is not None` instead.
            y_moved = pallas_device_copy(y)
            d_moved = pallas_device_copy(d) if d is not None else None
            return (y_moved, d_moved)

    @staticmethod
    def detect_forward_mode(u, du, y, d):
        if (y is None) and (d is None):
            return Model.GEN_AND_PRED
        elif (y is None) and (d is not None):
            return Model.GEN
        elif du is None and u is None and (y is not None) and (d is None):
            return Model.PRED
        raise ValueError("Unable to detect the forward mode")

    def learn(self, y, yhat, d, dhat):
        mode = Model.detect_learn_mode(y, yhat, d, dhat)
        loss_as_float = -1.0
        y_clean, yhat_clean, d_clean, dhat_clean = (y, yhat, d, dhat)
        if mode == Model.LEARN_GEN_AND_PRED:
            pass
        elif mode == Model.LEARN_GEN:
            d_clean = None
        elif mode == Model.LEARN_PRED:
            y_clean = None
        if yhat_clean is not None:
            yhat_clean = pallas_device_copy(yhat_clean)  # `.to(self.device)` no-op
        if dhat_clean is not None:
            dhat_clean = pallas_device_copy(dhat_clean)  # `.to(self.device)` no-op
        return (loss_as_float, y_clean, yhat_clean, d_clean, dhat_clean)

    @staticmethod
    def detect_learn_mode(y, yhat, d, dhat):
        if y is not None and yhat is not None and d is not None and dhat is not None:
            return Model.LEARN_GEN_AND_PRED
        elif y is not None and yhat is not None and dhat is None:
            return Model.LEARN_GEN
        elif yhat is None and d is not None and dhat is not None:
            return Model.LEARN_PRED
        raise ValueError("Unable to detect the forward mode")

    def compare(self, a, b, how="mse"):
        assert how in ["mse", "max"] or how.startswith("geq")
        a = jnp.asarray(a)
        b = jnp.asarray(b)
        if jnp.issubdtype(a.dtype, jnp.integer) and jnp.issubdtype(b.dtype, jnp.integer):
            return 1.0 - float(jnp.all(a == b))
        elif how == "mse":
            return pallas_mse(a, b)   # Pallas tiled reduction; on-device scalar
        elif how == "max":
            return 1.0 - float(jnp.argmax(a) == jnp.argmax(b))
        else:
            thres = float(how[3:])
            return 1.0 - float(jnp.sum((a > thres) == (b > thres))) / a.size


class EmptyModel(Model):
    def __init__(self):
        class EmptyGenerator:
            def forward(self, u, du, first=False):
                return None

        class EmptyPredictor:
            def forward(self, y, first=False):
                return None

        super().__init__(
            generator=EmptyGenerator(),
            predictor=EmptyPredictor(),
            attributes=[Attributes(shape=None, labels=None),
                        Attributes(shape=None, labels=None)],
        )


if __name__ == "__main__":
    key = jax.random.PRNGKey(0)
    k1, k2, k3, k4, k5, k6 = jax.random.split(key, 6)
    u = jax.random.normal(k1, (2, 4, 16, 16), jnp.float32)
    du = jax.random.normal(k2, (2, 4, 16, 16), jnp.float32)
    d_given = jax.random.normal(k3, (2, 8), jnp.float32)
    y_given = jax.random.normal(k4, (2, 4, 16, 16), jnp.float32)

    model = EmptyModel()

    # GEN mode: generator is empty -> y=None, d passed through.
    y_out, d_out = model.forward(u=u, du=du, y=None, d=d_given)
    assert y_out is None and d_out is d_given

    # PRED mode: predictor is empty -> d=None, y passed through (no-op move).
    y_pred, d_pred = model.forward(u=None, du=None, y=y_given, d=None)
    jax.block_until_ready(y_pred)
    assert d_pred is None
    assert bool(jnp.array_equal(y_pred, y_given))

    # learn (LEARN_GEN): yhat "moved to device" (no-op).
    loss, y_c, yhat_c, d_c, dhat_c = model.learn(y=y_given, yhat=y_pred, d=None, dhat=None)
    jax.block_until_ready(yhat_c)
    assert loss == -1.0 and d_c is None and dhat_c is None
    assert bool(jnp.array_equal(yhat_c, y_given))

    # compare (mse): single-block Pallas path (2048 elems -> (2, 1024) slab).
    same = model.compare(y_given, y_pred, how="mse")
    jax.block_until_ready(same)
    assert abs(float(same)) < 1e-6
    score = model.compare(u, y_given, how="mse")
    jax.block_until_ready(score)
    ref = float(jnp.mean((u - y_given) ** 2))
    assert abs(float(score) - ref) < 1e-4 * max(1.0, abs(ref))

    # Multi-block + ragged-last-block (in-kernel masking) path.
    big_a = jax.random.normal(k5, (8193, 128), jnp.float32)
    big_b = jax.random.normal(k6, (8193, 128), jnp.float32)
    big = pallas_mse(big_a, big_b)
    jax.block_until_ready(big)
    big_ref = float(jnp.mean((big_a - big_b) ** 2))
    assert abs(float(big) - big_ref) < 1e-4 * max(1.0, abs(big_ref))

    # Odd (non-128-divisible) sizes use the fused fallback path.
    odd_a = jax.random.normal(k5, (3, 100), jnp.float32)
    odd_b = jax.random.normal(k6, (3, 100), jnp.float32)
    odd = model.compare(odd_a, odd_b, how="mse")
    jax.block_until_ready(odd)
    odd_ref = float(jnp.mean((odd_a - odd_b) ** 2))
    assert abs(float(odd) - odd_ref) < 1e-5 * max(1.0, abs(odd_ref))

    # Integer compare path (torch's long/long branch).
    ints = jnp.array([1, 2, 3], jnp.int32)
    assert model.compare(ints, ints, how="mse") == 0.0

    print("KERNEL_OK")
</pallas_src>

<mosaic_0001>
module attributes {stable_mosaic.version = 11 : i64} {
  func.func @_mse_sum_kernel(%arg0: i32, %arg1: memref<1xi32, #tpu.memory_space<smem>>, %arg2: memref<2x1024xf32, #tpu.memory_space<vmem>>, %arg3: memref<2x1024xf32, #tpu.memory_space<vmem>>, %arg4: memref<1x1xf32, #tpu.memory_space<vmem>>, %arg5: memref<2x1024xf32, #tpu.memory_space<vmem>>) attributes {dimension_semantics = [#tpu.dimension_semantics<arbitrary>], iteration_bounds = array<i64: 1>, scalar_prefetch = 1 : i64, scratch_operands = 1 : i64, tpu.core_type = #tpu.core_type<tc>, window_params = [{transform_indices = @transform_0, window_bounds = array<i64: 2, 1024>}, {transform_indices = @transform_1, window_bounds = array<i64: 2, 1024>}, {pipeline_mode = #tpu.pipeline_mode<synchronous>, transform_indices = @transform_2, window_bounds = array<i64: 1, 1>}]} {
    %c0_i32 = arith.constant 0 : i32
    %0 = arith.cmpi eq, %arg0, %c0_i32 : i32
    %1 = arith.extui %0 : i1 to i32
    %c0_i32_0 = arith.constant 0 : i32
    %2 = arith.cmpi ne, %1, %c0_i32_0 : i32
    scf.if %2 {
      %cst = arith.constant 0.000000e+00 : f32
      %13 = vector.broadcast %cst : f32 to vector<2x1024xf32>
      %c0_10 = arith.constant 0 : index
      %c0_11 = arith.constant 0 : index
      %14 = vector.load %arg5[%c0_10, %c0_11] : memref<2x1024xf32, #tpu.memory_space<vmem>>, vector<2x1024xf32>
      tpu.vector_store %arg5[%c0_10, %c0_11], %13 {strides = array<i32>} : memref<2x1024xf32, #tpu.memory_space<vmem>>, vector<2x1024xf32>,
    } else {
    }
    %c0 = arith.constant 0 : index
    %c0_1 = arith.constant 0 : index
    %3 = vector.load %arg2[%c0, %c0_1] : memref<2x1024xf32, #tpu.memory_space<vmem>>, vector<2x1024xf32>
    %c0_2 = arith.constant 0 : index
    %c0_3 = arith.constant 0 : index
    %4 = vector.load %arg3[%c0_2, %c0_3] : memref<2x1024xf32, #tpu.memory_space<vmem>>, vector<2x1024xf32>
    %5 = arith.subf %3, %4 : vector<2x1024xf32>
    %6 = arith.mulf %5, %5 : vector<2x1024xf32>
    %c0_4 = arith.constant 0 : index
    %c0_5 = arith.constant 0 : index
    %7 = vector.load %arg5[%c0_4, %c0_5] : memref<2x1024xf32, #tpu.memory_space<vmem>>, vector<2x1024xf32>
    %8 = arith.addf %7, %6 : vector<2x1024xf32>
    %c0_6 = arith.constant 0 : index
    %c0_7 = arith.constant 0 : index
    %9 = vector.load %arg5[%c0_6, %c0_7] : memref<2x1024xf32, #tpu.memory_space<vmem>>, vector<2x1024xf32>
    tpu.vector_store %arg5[%c0_6, %c0_7], %8 {strides = array<i32>} : memref<2x1024xf32, #tpu.memory_space<vmem>>, vector<2x1024xf32>,
    %c0_i32_8 = arith.constant 0 : i32
    %10 = arith.cmpi eq, %arg0, %c0_i32_8 : i32
    %11 = arith.extui %10 : i1 to i32
    %c0_i32_9 = arith.constant 0 : i32
    %12 = arith.cmpi ne, %11, %c0_i32_9 : i32
    scf.if %12 {
      %c0_10 = arith.constant 0 : index
      %c0_11 = arith.constant 0 : index
      %13 = vector.load %arg5[%c0_10, %c0_11] : memref<2x1024xf32, #tpu.memory_space<vmem>>, vector<2x1024xf32>
      %14 = vector.shape_cast %13 : vector<2x1024xf32> to vector<1x2x1024xf32>
      %cst = arith.constant dense<0.000000e+00> : vector<1xf32>
      %15 = vector.multi_reduction <add>, %14, %cst [1, 2] : vector<1x2x1024xf32> to vector<1xf32>
      %16 = vector.shape_cast %15 : vector<1xf32> to vector<1x1x1xf32>
      %17 = vector.extract %16[0, 0, 0] : f32 from vector<1x1x1xf32>
      %18 = vector.broadcast %17 : f32 to vector<1x1xf32>
      %c0_12 = arith.constant 0 : index
      %c0_13 = arith.constant 0 : index
      %19 = vector.load %arg4[%c0_12, %c0_13] : memref<1x1xf32, #tpu.memory_space<vmem>>, vector<1x1xf32>
      tpu.vector_store %arg4[%c0_12, %c0_13], %18 {strides = array<i32>} : memref<1x1xf32, #tpu.memory_space<vmem>>, vector<1x1xf32>,
    } else {
    }
    return
  }
  func.func @transform_0(%arg0: i32, %arg1: memref<1xi32, #tpu.memory_space<smem>>) -> (i32, i32) {
    %c0_i32 = arith.constant 0 : i32
    %c0_i32_0 = arith.constant 0 : i32
    return %arg0, %c0_i32 : i32, i32
  }
  func.func @transform_1(%arg0: i32, %arg1: memref<1xi32, #tpu.memory_space<smem>>) -> (i32, i32) {
    %c0_i32 = arith.constant 0 : i32
    %c0_i32_0 = arith.constant 0 : i32
    return %arg0, %c0_i32 : i32, i32
  }
  func.func @transform_2(%arg0: i32, %arg1: memref<1xi32, #tpu.memory_space<smem>>) -> (i32, i32) {
    %c0_i32 = arith.constant 0 : i32
    %c0_i32_0 = arith.constant 0 : i32
    %c0_i32_1 = arith.constant 0 : i32
    return %c0_i32, %c0_i32_0 : i32, i32
  }
}

</mosaic_0001>

<llo_original>
// kernel: _mse_jit.1
$region0: #{_mse_jit.1}
  #allocation0 [shape = 'u32[]', space=smem, size = 0x4, offset = 0x4, fixed_abs, tag = 'smem constant byte address 0x4 - core index']
  #allocation1 [shape = 'u32[144,128]{1,0:T(1,128)}', space=vmem, size = 0x12000, scoped, tag = 'internal scratch']
  #allocation2 [shape = 'f32[2,1024]{1,0:T(2,128)}', space=vmem, size = 0x2000, scoped, tag = 'scratch operand']
  #allocation3 [shape = 's32[1]{0}', space=sflag, size = 0x4, scoped, tag = 'scoped memory for _mse_jit.1']
  #allocation4 [shape = 's32[1]{0:T(128)S(6)}', space=smem, size = 0x200, scoped, tag = 'prefetched SMEM operand 0']
  %s0 = inlined_call_operand.<no memory space> [shape: s32[1], index: 0, kind: input, shape index: {}]
  %s1 = inlined_call_operand.vmem [shape: f32[2,1024], index: 1, kind: input, shape index: {}]
  %s2 = inlined_call_operand.vmem [shape: f32[2,1024], index: 2, kind: input, shape index: {}]
  %s3 = inlined_call_operand.hbm [shape: f32[1,1], index: 3, kind: output, shape index: {}]
  %s4 = sld [smem:[#allocation0]]
  $region26: #{_mse_jit.1} parent=0
    _
  %s6 = ssub.s32 1, %s4
  %s7 = scalar_select 0, %s6, %s4
  %8 = sst [smem:[#allocation4]] %s0
  $region1: #{_mse_jit.1} parent=0
    #allocation5 [shape = 'u8[512]{0}', space=vmem, size = 0x400, scoped, tag = 'output window, operand 0, single buffered']
    #allocation6 [shape = 's32[1]{0}', space=sflag, size = 0x4, scoped, tag = 'scoped memory for _mse_jit.1']
    %9 = vsyncpa [#allocation6], 0
    // Predicated region
    $region2: #{_mse_jit.1} parent=1 // pred_check
      _
    $region3: #{_mse_jit.1} parent=1 // pred_check_branch
      %11 = sbr.rel (0) target = $region5
    $region4: #{_mse_jit.1} parent=1 // pred_region
      _
    $region5: #{_mse_jit.1} parent=1 // pred_fallthru
      _
    // Predicated region
    $region6: #{_mse_jit.1} parent=1 // pred_check
      _
    $region7: #{_mse_jit.1} parent=1 // pred_check_branch
      %13 = sbr.rel (0) target = $region9
    $region8: #{_mse_jit.1} parent=1 // pred_region
      _
    $region9: #{_mse_jit.1} parent=1 // pred_fallthru
      _
    %p14 = scmp.eq.s32.totalorder 0, 0
    // Predicated region
    $region10: #{_mse_jit.1} parent=1 // pred_check
      %p15 = pneg %p14
    $region11: #{_mse_jit.1} parent=1 // pred_check_branch
      %17 = sbr.rel (%p15) target = $region13
    $region12: #{_mse_jit.1} parent=1 // pred_region
      %18 = vst [vmem:[#allocation2] sm:$0xff] 0.0
      %19 = vst [vmem:[#allocation2 + $0x8] sm:$0xff] 0.0
    $region13: #{_mse_jit.1} parent=1 // pred_fallthru
      _
    %v20 = vld [vmem:[%s1] sm:$0xff]
    %v21 = vld [vmem:[%s1 + $0x8] sm:$0xff]
    %v22 = vld [vmem:[%s2] sm:$0xff]
    %v23 = vld [vmem:[%s2 + $0x8] sm:$0xff]
    %v24 = vsub.f32 %v20, %v22
    %v25 = vsub.f32 %v21, %v23
    %v26 = vmul.f32 %v24, %v24
    %v27 = vmul.f32 %v25, %v25
    %v28 = vld [vmem:[#allocation2] sm:$0xff]
    %v29 = vld [vmem:[#allocation2 + $0x8] sm:$0xff]
    %v30 = vadd.f32 %v28, %v26
    %v31 = vadd.f32 %v29, %v27
    %32 = vst [vmem:[#allocation2] sm:$0xff] %v30
    %33 = vst [vmem:[#allocation2 + $0x8] sm:$0xff] %v31
    // Predicated region
    $region14: #{_mse_jit.1} parent=1 // pred_check
      %p34 = pneg %p14
    $region15: #{_mse_jit.1} parent=1 // pred_check_branch
      %36 = sbr.rel (%p34) target = $region17
    $region16: #{_mse_jit.1} parent=1 // pred_region
      %v37 = vld [vmem:[#allocation2] sm:$0xff]
      %v38 = vld [vmem:[#allocation2 + $0x8] sm:$0xff]
      %v41 = vcombine.high %v37, %v37
      %v43 = vunpack.c.l.s4 1983009808
      %v44 = vunpack.c.0.s8 %v43
      %v45 = vlaneseq
      %v46 = vshrl.u32 %v45, 7
      %v47 = vsub.s32 %v44, %v46
      %v48 = vrot.slane %v37, %v47
      %v50 = vunpack.c.l.s4 1983009808
      %v51 = vunpack.c.0.s8 %v50
      %v52 = vlaneseq
      %v53 = vshrl.u32 %v52, 7
      %v54 = vsub.s32 %v51, %v53
      %v55 = vrot.slane %v41, %v54
      %v56 = vcombine.high %v48, %v48
      %v57 = vcombine.high %v55, %v55
      %v58 = vcombine.high %v38, %v38
      %v60 = vunpack.c.l.s4 1983009808
      %v61 = vunpack.c.0.s8 %v60
      %v62 = vlaneseq
      %v63 = vshrl.u32 %v62, 7
      %v64 = vsub.s32 %v61, %v63
      %v65 = vrot.slane %v38, %v64
      %v67 = vunpack.c.l.s4 1983009808
      %v68 = vunpack.c.0.s8 %v67
      %v69 = vlaneseq
      %v70 = vshrl.u32 %v69, 7
      %v71 = vsub.s32 %v68, %v70
      %v72 = vrot.slane %v58, %v71
      %v73 = vcombine.high %v65, %v65
      %v74 = vcombine.high %v72, %v72
      %vm83 = vcmask 1041408
      %v84 = vsel %vm83, %v48, 0.0
      %v85 = vsel %vm83, %v56, 0.0
      %v86 = vadd.f32 %v84, %v85
      %v87 = vsel %vm83, %v55, 0.0
      %v88 = vadd.f32 %v86, %v87
      %v89 = vsel %vm83, %v57, 0.0
      %v90 = vadd.f32 %v88, %v89
      %v91 = vsel %vm83, %v65, 0.0
      %v92 = vadd.f32 %v90, %v91
      %v93 = vsel %vm83, %v73, 0.0
      %v94 = vadd.f32 %v92, %v93
      %v95 = vsel %vm83, %v72, 0.0
      %v96 = vadd.f32 %v94, %v95
      %v97 = vsel %vm83, %v74, 0.0
      %v98 = vadd.f32 %v96, %v97
      %99 = vadd.xlane.f32.xlu0 %v98
      %v100 = vpop.xlane.xlu0 %99
      %v101 = vrot.slane %v100, 4
      %v102 = vadd.f32 %v100, %v101
      %v103 = vrot.slane %v102, 2
      %v104 = vadd.f32 %v102, %v103
      %v105 = vrot.slane %v104, 1
      %v106 = vadd.f32 %v104, %v105
      %s107 = vtos %v106
      %v108 = vstv %s107
      %vm109 = vcmask 0
      %110 = vst.msk [vmem:[#allocation5] sm:$0x1] %vm109, %v108
    $region17: #{_mse_jit.1} parent=1 // pred_fallthru
      _
    // Predicated region
    $region18: #{_mse_jit.1} parent=1 // pred_check
      _
    $region19: #{_mse_jit.1} parent=1 // pred_check_branch
      %112 = sbr.rel (0) target = $region21
    $region20: #{_mse_jit.1} parent=1 // pred_region
      %s114 = ssub.s32 16, 16
      %115 = vsyncadd [#allocation6], %s114
      %s117 = sshll.u32 [#allocation5], 4
      %s118 = int_to_ptr.vmem [resolvable:$true] %s117
      %120 = dma.vmem_to_hbm [thread:$0]  %s118, 16, %s3, [#allocation6]
    $region21: #{_mse_jit.1} parent=1 // pred_fallthru
      _
    // Predicated region
    $region22: #{_mse_jit.1} parent=1 // pred_check
      _
    $region23: #{_mse_jit.1} parent=1 // pred_check_branch
      %122 = sbr.rel (0) target = $region25
    $region24: #{_mse_jit.1} parent=1 // pred_region
      %123 = dma.done [#allocation6], 16
    $region25: #{_mse_jit.1} parent=1 // pred_fallthru
      _
    %124 = vsyncpa [#allocation6], 1

</llo_original>
